<compile_context>
chip_gen: v7x
topology: tpu7x:2x2x1
jax: 0.10.0
libtpu: 0.0.40
codegen_flags: <defaults>
</compile_context>

<pallas_src>
import math

import jax
import jax.numpy as jnp
from jax.experimental import pallas as pl
from jax.experimental.pallas import tpu as pltpu


def _round_up(v, m):
    return ((v + m - 1) // m) * m


def _vmem_capacity_bytes():
    """Per-core VMEM capacity; conservative v7x default if the query fails."""
    try:
        return int(pltpu.get_tpu_info().vmem_capacity_bytes)
    except Exception:
        return 64 << 20


def _choose_row_tile(n, in_features, dim, x_itemsize, out_itemsize, tm_max,
                     tile_budget_bytes):
    """Balanced row tile: minimal padding, VMEM-bounded, >=2 tiles when useful."""
    # Resident, single-buffered weight (bf16) + bias (f32).
    fixed = in_features * dim * 2 + dim * 4
    # Double-buffered x tile + double-buffered out tile, per row.
    per_row = 2 * in_features * x_itemsize + 2 * dim * out_itemsize
    tm_fit = max(16, ((tile_budget_bytes - fixed) // per_row) // 16 * 16)
    tm_cap = max(16, min(tm_max, tm_fit))

    min_tiles = 2 if n >= 32 else 1      # let ("parallel",) feed both v7x TCs
    n_tiles = max(min_tiles, pl.cdiv(n, tm_cap))
    if n_tiles == 1:
        # Single tile covering exactly all rows: block dim == full array dim,
        # so it is always a legal block shape and there is no OOB region.
        return n, 1
    tm = _round_up(pl.cdiv(n, n_tiles), 16)
    return tm, pl.cdiv(n, tm)


def _va_linear_kernel(x_ref, w_ref, b_ref, o_ref):
    # Cast x to the MXU dtype in vregs (free on the VPU; x HBM traffic stays
    # a single native-dtype read).
    x = x_ref[...].astype(w_ref.dtype)
    y = jnp.dot(x, w_ref[...], preferred_element_type=jnp.float32)
    y = y + b_ref[...]                       # (1, dim) f32 bias, broadcast over rows
    # Exact SiLU: y * sigmoid(y) = y / (1 + exp(-y)); exp lands on the EUP and
    # the kernel is mem-bound, so the exact form costs nothing vs. approx.
    o_ref[...] = (y / (1.0 + jnp.exp(-y))).astype(o_ref.dtype)


def prepare_params(weight, bias, *, mxu_dtype=jnp.bfloat16):
    """One-time (init-time) parameter prep, hoisted out of the per-call path.

    weight: (variables*dim, dim)  -- transposed PyTorch nn.Linear weight
    bias:   (dim,)
    """
    return weight.astype(mxu_dtype), bias.reshape(1, -1).astype(jnp.float32)


def variable_aggregation_linear(x, w_prep, b_prep, *, variables, dim,
                                tm=2048, out_dtype=None):
    """Pallas equivalent of VariableAggregation_Linear.forward.

    x:      any shape whose trailing dims flatten to variables*dim
    w_prep: (variables*dim, dim) MXU-dtype weight from `prepare_params`
    b_prep: (1, dim) f32 bias from `prepare_params`
    returns (N, dim) with N = x.size / (variables*dim), dtype out_dtype or x.dtype
    """
    in_features = variables * dim
    x2d = x.reshape(-1, in_features)           # trailing-dim collapse: no copy
    n = x2d.shape[0]
    out_dtype = x2d.dtype if out_dtype is None else out_dtype

    vmem_cap = _vmem_capacity_bytes()
    vmem_limit = min((vmem_cap * 3) // 4, 96 << 20)   # ~96 MiB v5e/v6e, ~48 MiB v7x
    tile_budget = vmem_limit // 2                     # our own accounting budget
    tm_eff, n_tiles = _choose_row_tile(
        n, in_features, dim, x2d.dtype.itemsize, jnp.dtype(out_dtype).itemsize,
        tm, tile_budget)

    cost = pl.CostEstimate(
        flops=2 * n * in_features * dim + 3 * n * dim,
        transcendentals=n * dim,
        bytes_accessed=(x2d.size * x2d.dtype.itemsize
                        + w_prep.size * w_prep.dtype.itemsize
                        + b_prep.size * b_prep.dtype.itemsize
                        + n * dim * jnp.dtype(out_dtype).itemsize),
    )

    out = pl.pallas_call(
        _va_linear_kernel,
        out_shape=jax.ShapeDtypeStruct((n, dim), out_dtype),
        grid=(n_tiles,),
        in_specs=[
            # x: streamed row tiles in native dtype (double-buffered).
            pl.BlockSpec((tm_eff, in_features), lambda i: (i, 0)),
            # weight / bias: constant block -> VMEM-resident, single-buffered.
            pl.BlockSpec((in_features, dim), lambda i: (0, 0),
                         pipeline_mode=pl.Buffered(1)),
            pl.BlockSpec((1, dim), lambda i: (0, 0),
                         pipeline_mode=pl.Buffered(1)),
        ],
        # Output at its exact width: last block dim == full array dim, so no
        # lane padding and no post-kernel slice; out-of-bounds rows of a
        # partial last tile are dropped.
        out_specs=pl.BlockSpec((tm_eff, dim), lambda i: (i, 0)),
        compiler_params=pltpu.CompilerParams(
            dimension_semantics=("parallel",),   # shard row tiles across TCs
            vmem_limit_bytes=vmem_limit,
        ),
        cost_estimate=cost,
    )(x2d, w_prep, b_prep)
    # TODO(synk): add a K (in_features) grid axis with an f32 VMEM accumulator
    # (init/finalize via pl.when) for configs where variables*dim is large
    # enough that the resident weight / x row tile threatens v7x's 64 MiB VMEM.
    return out


def _reference(x, weight, bias, *, variables, dim):
    x2d = x.reshape(-1, variables * dim)
    y = x2d @ weight + bias[None, :]
    return y * jax.nn.sigmoid(y)


if __name__ == "__main__":
    # Module config (matches the PyTorch defaults, small shapes).
    blocks, variables, dim = 3, 2, 64
    batch = 2

    key = jax.random.PRNGKey(0)
    kx, kw, kb = jax.random.split(key, 3)

    in_features = variables * dim
    bound = 1.0 / math.sqrt(in_features)
    # weight stored transposed: (in_features, dim), so the op is x @ W + b.
    weight = jax.random.uniform(kw, (in_features, dim), jnp.float32, -bound, bound)
    bias = jax.random.uniform(kb, (dim,), jnp.float32, -bound, bound)

    # One-time parameter prep (parameter-init time, not per forward call).
    w_prep, b_prep = prepare_params(weight, bias)

    # Example input: (batch, blocks, variables, dim) -> reshape(-1, variables*dim)
    x = jax.random.normal(kx, (batch, blocks, variables, dim), jnp.float32)

    out = variable_aggregation_linear(x, w_prep, b_prep,
                                      variables=variables, dim=dim)
    out = jax.block_until_ready(out)

    ref = _reference(x, weight, bias, variables=variables, dim=dim)
    assert out.shape == (batch * blocks, dim), out.shape
    # bf16 MXU inputs (f32 accumulation, exact sigmoid) vs f32 reference.
    assert jnp.allclose(out, ref, atol=2e-2, rtol=2e-2), "mismatch vs reference"

    print("KERNEL_OK")
</pallas_src>

<mosaic_0001>
module attributes {stable_mosaic.version = 11 : i64} {
  func.func @_va_linear_kernel(%arg0: i32, %arg1: memref<6x128xf32, #tpu.memory_space<vmem>>, %arg2: memref<128x64xbf16, #tpu.memory_space<vmem>>, %arg3: memref<1x64xf32, #tpu.memory_space<vmem>>, %arg4: memref<6x64xf32, #tpu.memory_space<vmem>>) attributes {dimension_semantics = [#tpu.dimension_semantics<parallel>], iteration_bounds = array<i64: 1>, scalar_prefetch = 0 : i64, scratch_operands = 0 : i64, tpu.core_type = #tpu.core_type<tc>, window_params = [{transform_indices = @transform_0, window_bounds = array<i64: 6, 128>}, {pipeline_mode = #tpu.pipeline_mode<synchronous>, transform_indices = @transform_1, window_bounds = array<i64: 128, 64>}, {pipeline_mode = #tpu.pipeline_mode<synchronous>, transform_indices = @transform_2, window_bounds = array<i64: 1, 64>}, {transform_indices = @transform_3, window_bounds = array<i64: 6, 64>}]} {
    %c0 = arith.constant 0 : index
    %c0_0 = arith.constant 0 : index
    %0 = vector.load %arg1[%c0, %c0_0] : memref<6x128xf32, #tpu.memory_space<vmem>>, vector<6x128xf32>
    %1 = arith.truncf %0 : vector<6x128xf32> to vector<6x128xbf16>
    %c0_1 = arith.constant 0 : index
    %c0_2 = arith.constant 0 : index
    %2 = vector.load %arg2[%c0_1, %c0_2] : memref<128x64xbf16, #tpu.memory_space<vmem>>, vector<128x64xbf16>
    %cst = arith.constant dense<0.000000e+00> : vector<6x64xf32>
    %3 = tpu.matmul %1, %2, %cst {dimension_numbers = #tpu.dot_dimension_numbers<[1], [0], [0], [1], [0, 0, 1, 1], [], []>} : vector<6x128xbf16>, vector<128x64xbf16>, vector<6x64xf32> -> vector<6x64xf32>
    %c0_3 = arith.constant 0 : index
    %c0_4 = arith.constant 0 : index
    %4 = vector.load %arg3[%c0_3, %c0_4] : memref<1x64xf32, #tpu.memory_space<vmem>>, vector<1x64xf32>
    %5 = vector.broadcast %4 : vector<1x64xf32> to vector<6x64xf32>
    %6 = arith.addf %3, %5 : vector<6x64xf32>
    %cst_5 = arith.constant 0.000000e+00 : f32
    %7 = vector.broadcast %cst_5 : f32 to vector<6x64xf32>
    %8 = arith.subf %7, %6 : vector<6x64xf32>
    %9 = math.exp %8 : vector<6x64xf32>
    %cst_6 = arith.constant 1.000000e+00 : f32
    %10 = vector.broadcast %cst_6 : f32 to vector<6x64xf32>
    %11 = arith.addf %10, %9 : vector<6x64xf32>
    %12 = arith.divf %6, %11 : vector<6x64xf32>
    %c0_7 = arith.constant 0 : index
    %c0_8 = arith.constant 0 : index
    %13 = vector.load %arg4[%c0_7, %c0_8] : memref<6x64xf32, #tpu.memory_space<vmem>>, vector<6x64xf32>
    tpu.vector_store %arg4[%c0_7, %c0_8], %12 {strides = array<i32>} : memref<6x64xf32, #tpu.memory_space<vmem>>, vector<6x64xf32>,
    return
  }
  func.func @transform_0(%arg0: i32) -> (i32, i32) {
    %c0_i32 = arith.constant 0 : i32
    %c0_i32_0 = arith.constant 0 : i32
    return %arg0, %c0_i32 : i32, i32
  }
  func.func @transform_1(%arg0: i32) -> (i32, i32) {
    %c0_i32 = arith.constant 0 : i32
    %c0_i32_0 = arith.constant 0 : i32
    %c0_i32_1 = arith.constant 0 : i32
    return %c0_i32, %c0_i32_0 : i32, i32
  }
  func.func @transform_2(%arg0: i32) -> (i32, i32) {
    %c0_i32 = arith.constant 0 : i32
    %c0_i32_0 = arith.constant 0 : i32
    %c0_i32_1 = arith.constant 0 : i32
    return %c0_i32, %c0_i32_0 : i32, i32
  }
  func.func @transform_3(%arg0: i32) -> (i32, i32) {
    %c0_i32 = arith.constant 0 : i32
    %c0_i32_0 = arith.constant 0 : i32
    return %arg0, %c0_i32 : i32, i32
  }
}

</mosaic_0001>

<llo_original>
// kernel: tpu_custom_call.1
$region0: #{tpu_custom_call.1}
  #allocation0 [shape = 'u32[]', space=smem, size = 0x4, offset = 0x4, fixed_abs, tag = 'smem constant byte address 0x4 - core index']
  #allocation1 [shape = 'u32[144,128]{1,0:T(1,128)}', space=vmem, size = 0x12000, scoped, tag = 'internal scratch']
  %s0 = inlined_call_operand.vmem [shape: f32[6,128], index: 0, kind: input, shape index: {}]
  %s1 = inlined_call_operand.vmem [shape: bf16[128,64], index: 1, kind: input, shape index: {}]
  %s2 = inlined_call_operand.vmem [shape: f32[1,64], index: 2, kind: input, shape index: {}]
  %s3 = inlined_call_operand.hbm [shape: f32[6,64], index: 3, kind: output, shape index: {}]
  %s4 = sld [smem:[#allocation0]]
  $region22: #{tpu_custom_call.1} parent=0
    _
  %s6 = ssub.s32 1, %s4
  %s7 = scalar_select 0, %s6, %s4
  $region1: #{tpu_custom_call.1} parent=0
    #allocation2 [shape = 'u8[4096]{0}', space=vmem, size = 0x1000, scoped, tag = 'output window, operand 0, single buffered']
    #allocation3 [shape = 's32[1]{0}', space=sflag, size = 0x4, scoped, tag = 'scoped memory for tpu_custom_call.1']
    %8 = vsyncpa [#allocation3], 0
    // Predicated region
    $region2: #{tpu_custom_call.1} parent=1 // pred_check
      _
    $region3: #{tpu_custom_call.1} parent=1 // pred_check_branch
      %10 = sbr.rel (0) target = $region5
    $region4: #{tpu_custom_call.1} parent=1 // pred_region
      _
    $region5: #{tpu_custom_call.1} parent=1 // pred_fallthru
      _
    // Predicated region
    $region6: #{tpu_custom_call.1} parent=1 // pred_check
      _
    $region7: #{tpu_custom_call.1} parent=1 // pred_check_branch
      %12 = sbr.rel (0) target = $region9
    $region8: #{tpu_custom_call.1} parent=1 // pred_region
      _
    $region9: #{tpu_custom_call.1} parent=1 // pred_fallthru
      _
    // Predicated region
    $region10: #{tpu_custom_call.1} parent=1 // pred_check
      _
    $region11: #{tpu_custom_call.1} parent=1 // pred_check_branch
      %14 = sbr.rel (0) target = $region13
    $region12: #{tpu_custom_call.1} parent=1 // pred_region
      _
    $region13: #{tpu_custom_call.1} parent=1 // pred_fallthru
      _
    %v16 = vld [vmem:[%s0] sm:$0x3f]
    %v17 = vpack.c.bf16 %v16, %v16
    %v18 = vld [vmem:[%s1] sm:$0xf]
    %v19 = vld [vmem:[%s1 + $0x4] sm:$0xf]
    %v20 = vld [vmem:[%s1 + $0x8] sm:$0xf]
    %v21 = vld [vmem:[%s1 + $0xc] sm:$0xf]
    %v22 = vld [vmem:[%s1 + $0x10] sm:$0xf]
    %v23 = vld [vmem:[%s1 + $0x14] sm:$0xf]
    %v24 = vld [vmem:[%s1 + $0x18] sm:$0xf]
    %v25 = vld [vmem:[%s1 + $0x1c] sm:$0xf]
    %v26 = vld [vmem:[%s1 + $0x20] sm:$0xf]
    %v27 = vld [vmem:[%s1 + $0x24] sm:$0xf]
    %v28 = vld [vmem:[%s1 + $0x28] sm:$0xf]
    %v29 = vld [vmem:[%s1 + $0x2c] sm:$0xf]
    %v30 = vld [vmem:[%s1 + $0x30] sm:$0xf]
    %v31 = vld [vmem:[%s1 + $0x34] sm:$0xf]
    %v32 = vld [vmem:[%s1 + $0x38] sm:$0xf]
    %v33 = vld [vmem:[%s1 + $0x3c] sm:$0xf]
    %v34 = vld [vmem:[%s2] sm:$0x1]
    %v36 = vlaneseq
    %v37 = vshrl.u32 %v36, 7
    %v38 = vsub.s32 0, %v37
    %v39 = vrot.slane %v34, %v38
    %v57 = vunpack.c.l.b16 %v18
    %v58 = vunpack.c.l.b16 %v19
    %v59 = vunpack.c.l.b16 %v20
    %v60 = vunpack.c.l.b16 %v21
    %v61 = vunpack.c.l.b16 %v22
    %v62 = vunpack.c.l.b16 %v23
    %v63 = vunpack.c.l.b16 %v24
    %v64 = vunpack.c.l.b16 %v25
    %v65 = vunpack.c.l.b16 %v26
    %v66 = vunpack.c.l.b16 %v27
    %v67 = vunpack.c.l.b16 %v28
    %v68 = vunpack.c.l.b16 %v29
    %v69 = vunpack.c.l.b16 %v30
    %v70 = vunpack.c.l.b16 %v31
    %v71 = vunpack.c.l.b16 %v32
    %v72 = vunpack.c.l.b16 %v33
    %v73 = vpack.c.b16 %v58, %v57
    %v74 = vpack.c.b16 %v60, %v59
    %v75 = vpack.c.b16 %v62, %v61
    %v76 = vpack.c.b16 %v64, %v63
    %v77 = vpack.c.b16 %v66, %v65
    %v78 = vpack.c.b16 %v68, %v67
    %v79 = vpack.c.b16 %v70, %v69
    %v80 = vpack.c.b16 %v72, %v71
    %89 = vmatprep.subr.bf16.mxu0 0
    %90 = vmatpush1.bf16.msra.mxu0 %v73
    %91 = vmatprep.subr.bf16.mxu0 0
    %92 = vmatpush1.bf16.msra.mxu0 %v74
    %93 = vmatprep.subr.bf16.mxu0 0
    %94 = vmatpush1.bf16.msra.mxu0 %v75
    %95 = vmatprep.subr.bf16.mxu0 0
    %96 = vmatpush1.bf16.msra.mxu0 %v76
    %97 = vmatprep.subr.bf16.mxu0 0
    %98 = vmatpush1.bf16.msra.mxu0 %v77
    %99 = vmatprep.subr.bf16.mxu0 0
    %100 = vmatpush1.bf16.msra.mxu0 %v78
    %101 = vmatprep.subr.bf16.mxu0 0
    %102 = vmatpush1.bf16.msra.mxu0 %v79
    %103 = vmatprep.subr.bf16.mxu0 0
    %104 = vmatpush1.bf16.msra.mxu0 %v80
    %105 = vmatprep.subr.bf16.mxu0 0
    %106 = vmatpush1.bf16.msra.mxu0 0
    %107 = vmatprep.subr.bf16.mxu0 0
    %108 = vmatpush1.bf16.msra.mxu0 0
    %109 = vmatprep.subr.bf16.mxu0 0
    %110 = vmatpush1.bf16.msra.mxu0 0
    %111 = vmatprep.subr.bf16.mxu0 0
    %112 = vmatpush1.bf16.msra.mxu0 0
    %113 = vmatprep.subr.bf16.mxu0 0
    %114 = vmatpush1.bf16.msra.mxu0 0
    %115 = vmatprep.subr.bf16.mxu0 0
    %116 = vmatpush1.bf16.msra.mxu0 0
    %117 = vmatprep.subr.bf16.mxu0 0
    %118 = vmatpush1.bf16.msra.mxu0 0
    %119 = vmatprep.subr.bf16.mxu0 0
    %120 = vmatpush1.bf16.msra.mxu0 0
    %121 = vmatprep.mubr.bf16.mxu0 0
    %122 = vmatmul.mubr.bf16.gmra.mrb[0].mxu0 %v17
    %v123 = vpop.f32.mrb[0].mxu0
    %v124 = vadd.f32 %v39, %v123
    %v125 = vpop.f32.mrb[0].mxu0
    %v126 = vpop.f32.mrb[0].mxu0
    %v127 = vpop.f32.mrb[0].mxu0
    %128 = vdwg.mxu0
    %v129 = vsub.f32 0.0, %v124
    %v130 = vmul.f32 %v129, 1.442695
    %v131 = vpow.pop %v130
    %v132 = vadd.f32 %v131, 1.0
    %v133 = vrcp.pop %v132
    %v134 = vmul.f32 %v124, %v133
    %vm135 = vcmask 521216
    %136 = vst.msk [vmem:[#allocation2] sm:$0x3f] %vm135, %v134
    // Predicated region
    $region14: #{tpu_custom_call.1} parent=1 // pred_check
      _
    $region15: #{tpu_custom_call.1} parent=1 // pred_check_branch
      %138 = sbr.rel (0) target = $region17
    $region16: #{tpu_custom_call.1} parent=1 // pred_region
      %s140 = ssub.s32 128, 128
      %141 = vsyncadd [#allocation3], %s140
      %s143 = sshll.u32 [#allocation2], 4
      %s144 = int_to_ptr.vmem [resolvable:$true] %s143
      %146 = dma.vmem_to_hbm [thread:$0]  %s144, 128, %s3, [#allocation3]
    $region17: #{tpu_custom_call.1} parent=1 // pred_fallthru
      _
    // Predicated region
    $region18: #{tpu_custom_call.1} parent=1 // pred_check
      _
    $region19: #{tpu_custom_call.1} parent=1 // pred_check_branch
      %148 = sbr.rel (0) target = $region21
    $region20: #{tpu_custom_call.1} parent=1 // pred_region
      %149 = dma.done [#allocation3], 128
    $region21: #{tpu_custom_call.1} parent=1 // pred_fallthru
      _
    %150 = vsyncpa [#allocation3], 1

</llo_original>
